<compile_context>
chip_gen: v6e
topology: v6e:2x2x1
jax: 0.10.0
libtpu: 0.0.40
codegen_flags: <defaults>
</compile_context>

<pallas_src>
import functools
import math

import jax
import jax.numpy as jnp
from jax.experimental import pallas as pl
from jax.experimental.pallas import tpu as pltpu


def _conv1d_sigmoid(pooled, w_ref, pad_ref):
    """k-tap zero-padded cross-correlation along the channel (sublane) axis + sigmoid.

    pooled : (tb, C, 1) f32 value
    w_ref  : SMEM (k,) conv1d weight
    pad_ref: VMEM (tb, C + 2*align, 1) f32 scratch with align >= k//2 (sublane aligned)
    """
    tb, C, _ = pooled.shape
    k = w_ref.shape[0]
    pad = k // 2
    if pad == 0:                                   # k == 1: no shifts needed
        return jax.nn.sigmoid(w_ref[0] * pooled)
    align = (pad_ref.shape[1] - C) // 2
    # Zero only the halo strips; the centre is fully overwritten below. Done
    # every step (cheap: 2 x (tb, align, 1)) so correctness never depends on
    # which core executed grid step 0 under megacore sharding.
    halo = jnp.zeros((tb, align, 1), jnp.float32)
    pad_ref[:, pl.ds(0, align), :] = halo
    pad_ref[:, pl.ds(align + C, align), :] = halo
    pad_ref[:, pl.ds(align, C), :] = pooled        # sublane-aligned store
    acc = jnp.zeros((tb, C, 1), jnp.float32)
    for j in range(k):                             # tiny static loop (k = 3/5/...)
        acc = acc + w_ref[j] * pad_ref[:, pl.ds(align + j - pad, C), :]
    # TODO(synk): for very large C (>=512) with tb>=2, chunk this lane-width-1
    # attn path (or keep it lane-dense) to bound vreg pressure.
    return jax.nn.sigmoid(acc)


def _eca_fused_kernel(w_ref, x_ref, o_ref, pad_ref):
    # w_ref  : SMEM (k,)            conv1d weight
    # x_ref  : VMEM (tb, C, HW)     input batch tile
    # o_ref  : VMEM (tb, C, HW)     output batch tile
    # pad_ref: VMEM (tb, C+2A, 1)   zero-padded pooled scratch
    x = x_ref[...]
    pooled = jnp.max(x, axis=-1, keepdims=True).astype(jnp.float32)   # (tb, C, 1)
    attn = _conv1d_sigmoid(pooled, w_ref, pad_ref)                    # f32
    # Multiply in x's native dtype (bf16 stays bf16: halves vreg footprint of
    # the dominant elementwise pass); attn itself was computed in f32.
    o_ref[...] = x * attn.astype(x_ref.dtype)


def _eca_pool_kernel(w_ref, x_ref, attn_ref, pad_ref, *, hw_total):
    # Phase A of the two-phase path: spatial-max reduce over HW tiles into the
    # resident (tb, C, 1) output block, then conv + sigmoid on the last tile.
    hw_idx = pl.program_id(1)
    x = x_ref[...]
    tb, C, thw = x_ref.shape
    if hw_total % thw:                             # mask OOB lanes of last tile
        lane = jax.lax.broadcasted_iota(jnp.int32, x.shape, 2)
        valid = (hw_idx * thw + lane) < hw_total
        x = jnp.where(valid, x, jnp.array(-jnp.inf, x.dtype))
    tile_max = jnp.max(x, axis=-1, keepdims=True).astype(jnp.float32)

    @pl.when(hw_idx == 0)
    def _init():
        attn_ref[...] = tile_max

    @pl.when(hw_idx > 0)
    def _update():
        attn_ref[...] = jnp.maximum(attn_ref[...], tile_max)

    @pl.when(hw_idx == pl.num_programs(1) - 1)
    def _finalize():
        attn_ref[...] = _conv1d_sigmoid(attn_ref[...], w_ref, pad_ref)


def _eca_apply_kernel(attn_ref, x_ref, o_ref):
    # Phase B: broadcast-scale, tiled over the (lane) spatial axis.
    o_ref[...] = x_ref[...] * attn_ref[...].astype(x_ref.dtype)


def eca_layer_adaptive_kernel(x, w, *, vmem_budget_bytes=None, donate_x=False):
    """ECA forward: x * sigmoid(conv1d_k(maxpool_hw(x))), broadcast over H, W.

    x: (N, C, H, W); w: Conv1d(1, 1, k, bias=False) weight (reshapable to (k,)).
    donate_x=True aliases x's HBM buffer with the output (inference callers).
    """
    N, C, H, W = x.shape
    HW = H * W
    x_flat = x.reshape(N, C, HW)
    w_flat = jnp.asarray(w, jnp.float32).reshape(-1)
    k = int(w_flat.shape[0])
    pad = k // 2
    align = ((pad + 7) // 8) * 8                   # sublane-aligned halo (>= pad)
    itemsize = jnp.dtype(x.dtype).itemsize
    out_shape = jax.ShapeDtypeStruct((N, C, HW), x.dtype)
    mib = 1024 * 1024

    # ---- device-aware VMEM budget (v7x has only 64 MiB physical VMEM) ----
    try:
        vmem_cap = int(pltpu.get_tpu_info().vmem_capacity_bytes)
    except Exception:
        vmem_cap = 64 * mib                        # conservative fallback (v7x)
    avail = max(vmem_cap - 8 * mib, 8 * mib)       # headroom for Mosaic internals
    if vmem_budget_bytes is None:
        vmem_budget_bytes = max(vmem_cap // 4, 8 * mib)   # 32 MiB v5e/v6e, 16 MiB v7x
    budget = min(int(vmem_budget_bytes), avail)

    alias = {"input_output_aliases": {1: 0}} if donate_x else {}

    # Footprint of one fused (1, C, HW) batch row: in + out, double-buffered.
    per_batch = 4 * C * HW * itemsize

    # TODO(synk): for HW < 128 the lane axis is under-utilized (masked stores);
    # a channels-on-lanes layout would need NHWC input or an HBM transpose,
    # which costs more traffic than the masked stores for this mem-bound op,
    # so the NCHW layout is kept for all HW.

    if per_batch <= budget:
        # ------------------- fused single-pass path -------------------
        tb = max(1, budget // per_batch)
        if N >= 2:
            tb = min(tb, pl.cdiv(N, 2))            # >= 2 grid steps: keep both TCs busy
        tb = min(tb, N)
        grid = (pl.cdiv(N, tb),)                   # partial last block OK: rows independent
        need = tb * per_batch + tb * (C + 2 * align) * 4 + 2 * mib
        out = pl.pallas_call(
            _eca_fused_kernel,
            out_shape=out_shape,
            grid=grid,
            in_specs=[
                pl.BlockSpec(memory_space=pltpu.MemorySpace.SMEM),   # conv weight
                pl.BlockSpec((tb, C, HW), lambda n: (n, 0, 0)),      # batch tile
            ],
            out_specs=pl.BlockSpec((tb, C, HW), lambda n: (n, 0, 0)),
            scratch_shapes=[pltpu.VMEM((tb, C + 2 * align, 1), jnp.float32)],
            compiler_params=pltpu.CompilerParams(
                dimension_semantics=("parallel",),
                vmem_limit_bytes=int(min(max(int(need * 1.25), 4 * mib), avail)),
            ),
            **alias,
        )(w_flat, x_flat)
        return out.reshape(N, C, H, W)

    # ------ two-phase path: a single (1, C, HW) block exceeds the budget ------
    # Phase A reduces the spatial max over lane-dense HW tiles (accumulator
    # output block, HW axis "arbitrary") and finishes with conv + sigmoid;
    # phase B re-reads x tiled over HW and broadcast-scales. The extra read of
    # x is the unavoidable cost of a global max that does not fit VMEM.
    tb = 1
    if HW <= 128:
        thw = HW
    else:
        thw = max(128, (budget // (4 * tb * C * itemsize)) // 128 * 128)
        if thw >= HW:
            thw = HW
    n_hw = pl.cdiv(HW, thw)
    grid = (pl.cdiv(N, tb), n_hw)

    pool_need = (2 * tb * C * thw * itemsize + 2 * tb * C * 4
                 + tb * (C + 2 * align) * 4 + 2 * mib)
    attn = pl.pallas_call(
        functools.partial(_eca_pool_kernel, hw_total=HW),
        out_shape=jax.ShapeDtypeStruct((N, C, 1), jnp.float32),
        grid=grid,
        in_specs=[
            pl.BlockSpec(memory_space=pltpu.MemorySpace.SMEM),       # conv weight
            pl.BlockSpec((tb, C, thw), lambda n, h: (n, 0, h)),
        ],
        out_specs=pl.BlockSpec((tb, C, 1), lambda n, h: (n, 0, 0)),  # resident accumulator
        scratch_shapes=[pltpu.VMEM((tb, C + 2 * align, 1), jnp.float32)],
        compiler_params=pltpu.CompilerParams(
            dimension_semantics=("parallel", "arbitrary"),
            vmem_limit_bytes=int(min(max(int(pool_need * 1.25), 4 * mib), avail)),
        ),
    )(w_flat, x_flat)

    apply_need = 4 * tb * C * thw * itemsize + 4 * tb * C * 4 + 2 * mib
    out = pl.pallas_call(
        _eca_apply_kernel,
        out_shape=out_shape,
        grid=grid,
        in_specs=[
            pl.BlockSpec((tb, C, 1), lambda n, h: (n, 0, 0)),        # attn (broadcast)
            pl.BlockSpec((tb, C, thw), lambda n, h: (n, 0, h)),
        ],
        out_specs=pl.BlockSpec((tb, C, thw), lambda n, h: (n, 0, h)),
        compiler_params=pltpu.CompilerParams(
            dimension_semantics=("parallel", "parallel"),
            vmem_limit_bytes=int(min(max(int(apply_need * 1.25), 4 * mib), avail)),
        ),
        **alias,
    )(attn, x_flat)
    return out.reshape(N, C, H, W)


def adaptive_kernel_size(channel, b=1, gamma=2):
    t = int(abs(math.log(channel, 2) + b) / gamma)
    return t if t % 2 else t + 1


def _reference(x, w):
    # Pure-JAX reference matching the PyTorch forward.
    k = w.shape[-1]
    pad = k // 2
    pooled = jnp.max(x, axis=(2, 3))                        # (N, C)
    y = jax.lax.conv_general_dilated(
        pooled[:, None, :], w.reshape(1, 1, k),             # (N,1,C) * (1,1,k)
        window_strides=(1,), padding=[(pad, pad)],
        dimension_numbers=("NCH", "OIH", "NCH"))
    attn = jax.nn.sigmoid(y)[:, 0, :]                       # (N, C)
    return x * attn[:, :, None, None]


if __name__ == "__main__":
    key = jax.random.PRNGKey(0)
    kx1, kx2, kw = jax.random.split(key, 3)

    C = 16
    k_size = adaptive_kernel_size(C)                        # C=16 -> k=3
    # Deterministic synthetic Conv1d(1, 1, k, bias=False) weight, PyTorch layout.
    w = (jax.random.normal(kw, (1, 1, k_size), dtype=jnp.float32)
         / jnp.sqrt(jnp.float32(k_size)))

    # 1) Fused path, f32. N=3 so tb=2 and the last batch block is partial.
    x1 = jax.random.normal(kx1, (3, C, 16, 16), dtype=jnp.float32)
    out1 = jax.block_until_ready(eca_layer_adaptive_kernel(x1, w))
    ref1 = _reference(x1, w)
    assert out1.shape == x1.shape
    assert jnp.allclose(out1, ref1, atol=1e-5, rtol=1e-5), "fused f32 mismatch"

    # 2) Fused path, bf16 input: attn computed in f32, applied in native bf16.
    x1_bf16 = x1.astype(jnp.bfloat16)
    out2 = jax.block_until_ready(eca_layer_adaptive_kernel(x1_bf16, w))
    ref2 = _reference(x1_bf16.astype(jnp.float32), w)
    assert out2.dtype == jnp.bfloat16
    assert jnp.allclose(out2.astype(jnp.float32), ref2, atol=5e-2, rtol=5e-2), \
        "fused bf16 mismatch"

    # 3) Two-phase path (forced by a tiny budget); HW=324 is not a multiple of
    #    the 128-lane tile, so the reduce-phase edge mask is exercised too.
    x2 = jax.random.normal(kx2, (2, C, 18, 18), dtype=jnp.float32)
    out3 = jax.block_until_ready(
        eca_layer_adaptive_kernel(x2, w, vmem_budget_bytes=32 * 1024))
    ref3 = _reference(x2, w)
    assert out3.shape == x2.shape
    assert jnp.allclose(out3, ref3, atol=1e-5, rtol=1e-5), "two-phase mismatch"

    print("KERNEL_OK")
</pallas_src>

<mosaic_0001>
module attributes {stable_mosaic.version = 11 : i64} {
  func.func @_eca_fused_kernel(%arg0: i32, %arg1: memref<3xf32, #tpu.memory_space<smem>>, %arg2: memref<2x16x256xf32, #tpu.memory_space<vmem>>, %arg3: memref<2x16x256xf32, #tpu.memory_space<vmem>>, %arg4: memref<2x32x1xf32, #tpu.memory_space<vmem>>) attributes {dimension_semantics = [#tpu.dimension_semantics<parallel>], iteration_bounds = array<i64: 2>, scalar_prefetch = 0 : i64, scratch_operands = 1 : i64, tpu.core_type = #tpu.core_type<tc>, window_params = [{transform_indices = @transform_0, window_bounds = array<i64: 3>}, {transform_indices = @transform_1, window_bounds = array<i64: 2, 16, 256>}, {transform_indices = @transform_2, window_bounds = array<i64: 2, 16, 256>}]} {
    %c0 = arith.constant 0 : index
    %c0_0 = arith.constant 0 : index
    %c0_1 = arith.constant 0 : index
    %0 = vector.load %arg2[%c0, %c0_0, %c0_1] : memref<2x16x256xf32, #tpu.memory_space<vmem>>, vector<2x16x256xf32>
    %cst = arith.constant dense<0xFF800000> : vector<2x16xf32>
    %1 = vector.multi_reduction <maximumf>, %0, %cst [2] : vector<2x16x256xf32> to vector<2x16xf32>
    %2 = vector.shape_cast %1 : vector<2x16xf32> to vector<2x16x1xf32>
    %cst_2 = arith.constant 0.000000e+00 : f32
    %3 = vector.broadcast %cst_2 : f32 to vector<2x8x1xf32>
    %c0_3 = arith.constant 0 : index
    %c0_4 = arith.constant 0 : index
    %c0_5 = arith.constant 0 : index
    %4 = vector.load %arg4[%c0_3, %c0_4, %c0_5] : memref<2x32x1xf32, #tpu.memory_space<vmem>>, vector<2x8x1xf32>
    tpu.vector_store %arg4[%c0_3, %c0_4, %c0_5], %3 {strides = array<i32>} : memref<2x32x1xf32, #tpu.memory_space<vmem>>, vector<2x8x1xf32>,
    %c0_6 = arith.constant 0 : index
    %c24 = arith.constant 24 : index
    %c0_7 = arith.constant 0 : index
    %5 = vector.load %arg4[%c0_6, %c24, %c0_7] : memref<2x32x1xf32, #tpu.memory_space<vmem>>, vector<2x8x1xf32>
    tpu.vector_store %arg4[%c0_6, %c24, %c0_7], %3 {strides = array<i32>} : memref<2x32x1xf32, #tpu.memory_space<vmem>>, vector<2x8x1xf32>,
    %c0_8 = arith.constant 0 : index
    %c8 = arith.constant 8 : index
    %c0_9 = arith.constant 0 : index
    %6 = vector.load %arg4[%c0_8, %c8, %c0_9] : memref<2x32x1xf32, #tpu.memory_space<vmem>>, vector<2x16x1xf32>
    tpu.vector_store %arg4[%c0_8, %c8, %c0_9], %2 {strides = array<i32>} : memref<2x32x1xf32, #tpu.memory_space<vmem>>, vector<2x16x1xf32>,
    %cst_10 = arith.constant 0.000000e+00 : f32
    %7 = vector.broadcast %cst_10 : f32 to vector<2x16x1xf32>
    %c0_11 = arith.constant 0 : index
    %8 = memref.load %arg1[%c0_11] : memref<3xf32, #tpu.memory_space<smem>>
    %c0_12 = arith.constant 0 : index
    %c7 = arith.constant 7 : index
    %c0_13 = arith.constant 0 : index
    %9 = vector.load %arg4[%c0_12, %c7, %c0_13] : memref<2x32x1xf32, #tpu.memory_space<vmem>>, vector<2x16x1xf32>
    %10 = vector.broadcast %8 : f32 to vector<2x16x1xf32>
    %11 = arith.mulf %10, %9 : vector<2x16x1xf32>
    %12 = arith.addf %7, %11 : vector<2x16x1xf32>
    %c1 = arith.constant 1 : index
    %13 = memref.load %arg1[%c1] : memref<3xf32, #tpu.memory_space<smem>>
    %c0_14 = arith.constant 0 : index
    %c8_15 = arith.constant 8 : index
    %c0_16 = arith.constant 0 : index
    %14 = vector.load %arg4[%c0_14, %c8_15, %c0_16] : memref<2x32x1xf32, #tpu.memory_space<vmem>>, vector<2x16x1xf32>
    %15 = vector.broadcast %13 : f32 to vector<2x16x1xf32>
    %16 = arith.mulf %15, %14 : vector<2x16x1xf32>
    %17 = arith.addf %12, %16 : vector<2x16x1xf32>
    %c2 = arith.constant 2 : index
    %18 = memref.load %arg1[%c2] : memref<3xf32, #tpu.memory_space<smem>>
    %c0_17 = arith.constant 0 : index
    %c9 = arith.constant 9 : index
    %c0_18 = arith.constant 0 : index
    %19 = vector.load %arg4[%c0_17, %c9, %c0_18] : memref<2x32x1xf32, #tpu.memory_space<vmem>>, vector<2x16x1xf32>
    %20 = vector.broadcast %18 : f32 to vector<2x16x1xf32>
    %21 = arith.mulf %20, %19 : vector<2x16x1xf32>
    %22 = arith.addf %17, %21 : vector<2x16x1xf32>
    %23 = arith.negf %22 : vector<2x16x1xf32>
    %24 = math.exp %23 : vector<2x16x1xf32>
    %cst_19 = arith.constant 1.000000e+00 : f32
    %25 = vector.broadcast %cst_19 : f32 to vector<2x16x1xf32>
    %26 = arith.addf %25, %24 : vector<2x16x1xf32>
    %27 = arith.divf %25, %26 : vector<2x16x1xf32>
    %28 = vector.broadcast %27 : vector<2x16x1xf32> to vector<2x16x256xf32>
    %29 = arith.mulf %0, %28 : vector<2x16x256xf32>
    %c0_20 = arith.constant 0 : index
    %c0_21 = arith.constant 0 : index
    %c0_22 = arith.constant 0 : index
    %30 = vector.load %arg3[%c0_20, %c0_21, %c0_22] : memref<2x16x256xf32, #tpu.memory_space<vmem>>, vector<2x16x256xf32>
    tpu.vector_store %arg3[%c0_20, %c0_21, %c0_22], %29 {strides = array<i32>} : memref<2x16x256xf32, #tpu.memory_space<vmem>>, vector<2x16x256xf32>,
    return
  }
  func.func @transform_0(%arg0: i32) -> i32 {
    %c0_i32 = arith.constant 0 : i32
    %c0_i32_0 = arith.constant 0 : i32
    return %c0_i32 : i32
  }
  func.func @transform_1(%arg0: i32) -> (i32, i32, i32) {
    %c0_i32 = arith.constant 0 : i32
    %c0_i32_0 = arith.constant 0 : i32
    %c0_i32_1 = arith.constant 0 : i32
    return %arg0, %c0_i32, %c0_i32_0 : i32, i32, i32
  }
  func.func @transform_2(%arg0: i32) -> (i32, i32, i32) {
    %c0_i32 = arith.constant 0 : i32
    %c0_i32_0 = arith.constant 0 : i32
    %c0_i32_1 = arith.constant 0 : i32
    return %arg0, %c0_i32, %c0_i32_0 : i32, i32, i32
  }
}

</mosaic_0001>

<llo_original>
// kernel: tpu_custom_call.1
$region0: #{tpu_custom_call.1}
  #allocation0 [shape = 'u32[]', space=smem, size = 0x4, offset = 0x4, fixed_abs, tag = 'smem constant byte address 0x4 - core index']
  #allocation1 [shape = 'u32[144,128]{1,0:T(1,128)}', space=vmem, size = 0x12000, scoped, tag = 'internal scratch']
  #allocation2 [shape = 'f32[2,32,1]{2,1,0:T(8,128)}', space=vmem, size = 0x8000, scoped, tag = 'scratch operand']
  %s0 = inlined_call_operand.hbm [shape: f32[3], index: 0, kind: input, shape index: {}]
  %s1 = inlined_call_operand.hbm [shape: f32[3,16,256], index: 1, kind: input, shape index: {}]
  %s2 = inlined_call_operand.hbm [shape: f32[3,16,256], index: 2, kind: output, shape index: {}]
  %s3 = sld [smem:[#allocation0]]
  $region49: #{tpu_custom_call.1} parent=0
    _
  %s5 = ssub.s32 1, %s3
  %s6 = scalar_select 0, %s5, %s3
  $region1: #{tpu_custom_call.1} parent=0
    #allocation3 [shape = 'u8[512]{0}', space=smem, size = 0x200, scoped, tag = 'input window, operand 0, single buffered']
    #allocation4 [shape = 's32[2]{0}', space=sflag, size = 0x8, scoped, tag = 'scoped memory for tpu_custom_call.1']
    #allocation5 [shape = 's32[2]{0}', space=sflag, size = 0x8, scoped, tag = 'scoped memory for tpu_custom_call.1']
    #allocation6 [shape = 's32[2]{0}', space=sflag, size = 0x8, scoped, tag = 'scoped memory for tpu_custom_call.1']
    #allocation7 [shape = 'u8[65536]{0}', space=vmem, size = 0x10000, scoped, tag = 'input window, operand 1']
    #allocation8 [shape = 'u8[65536]{0}', space=vmem, size = 0x10000, scoped, tag = 'output window, operand 0']
    %7 = vsyncpa [#allocation6], 0
    %8 = vsyncpa [#allocation4], 0
    %s9 = scalar_lea.sflag [#allocation4], 1
    %10 = vsyncpa %s9, 0
    %11 = vsyncpa [#allocation5], 0
    %s12 = scalar_lea.sflag [#allocation5], 1
    %13 = vsyncpa %s12, 0
    loop: start=0, step=1, limit=4
    $region2: #{tpu_custom_call.1} parent=1 // loop_pre_header
      _
    $region3: #{tpu_custom_call.1} parent=1 // loop_header
      %s15 = sphi 0, %s19
      %p16 = scmp.ge.s32.totalorder %s15, 4
      %s23 = sphi 0, %s23
      %s25 = sphi 0, %s23
      %s26 = sphi 0, %s25
      %s40 = sphi 0, %s26
      %s46 = sphi 0, %s48
      %s49 = sphi 0, %s46
      %s50 = sphi 0, %s49
      %s66 = sphi 0, %s50
      %s72 = sphi 0, %s74
      %s75 = sphi 0, %s72
      %s76 = sphi 0, %s75
      %s92 = sphi 0, %s76
    $region4: #{tpu_custom_call.1} parent=1 // loop_header_branch
      %18 = sbr.rel (%p16) target = $region8
    $region5: #{tpu_custom_call.1} parent=1 // loop_body
      %s20 = ssub.s32 %s15, 1
      %s21 = ssub.s32 %s15, 2
      %s22 = sadd.s32 %s15, 1
      %s24 = sadd.s32 %s23, 1
      %p27 = scmp.eq.s32.totalorder %s15, 1
      %p28 = scmp.ne.s32.totalorder %s23, %s25
      %p29 = scmp.eq.s32.totalorder %s15, 0
      %p30 = por %p28, %p29
      %p31 = scmp.ne.s32.totalorder %s23, %s25
      %p32 = scmp.eq.s32.totalorder %s20, 1
      %p33 = por %p31, %p32
      %p34 = scmp.ne.s32.totalorder %s25, %s26
      %p35 = scmp.eq.s32.totalorder %s20, 0
      %p36 = por %p34, %p35
      %p37 = scmp.ne.s32.totalorder %s25, %s26
      %p38 = scmp.eq.s32.totalorder %s21, 1
      %p39 = por %p37, %p38
      %p41 = scmp.ne.s32.totalorder %s26, %s40
      %p42 = scmp.eq.s32.totalorder %s21, 0
      %p43 = por %p41, %p42
      %s44 = ssub.s32 %s15, %s22
      %p45 = scmp.eq.s32.totalorder %s44, 0
      %s47 = sadd.s32 %s46, 1
      %s48 = scalar_select %p45, %s46, %s47
      %p51 = pneg %p45
      %p52 = scmp.eq.s32.totalorder %s15, 1
      %p53 = por %p51, %p52
      %p54 = scmp.ne.s32.totalorder %s46, %s49
      %p55 = scmp.eq.s32.totalorder %s15, 0
      %p56 = por %p54, %p55
      %p57 = scmp.ne.s32.totalorder %s46, %s49
      %p58 = scmp.eq.s32.totalorder %s20, 1
      %p59 = por %p57, %p58
      %p60 = scmp.ne.s32.totalorder %s49, %s50
      %p61 = scmp.eq.s32.totalorder %s20, 0
      %p62 = por %p60, %p61
      %p63 = scmp.ne.s32.totalorder %s49, %s50
      %p64 = scmp.eq.s32.totalorder %s21, 1
      %p65 = por %p63, %p64
      %p67 = scmp.ne.s32.totalorder %s50, %s66
      %p68 = scmp.eq.s32.totalorder %s21, 0
      %p69 = por %p67, %p68
      %s70 = ssub.s32 %s15, %s22
      %p71 = scmp.eq.s32.totalorder %s70, 0
      %s73 = sadd.s32 %s72, 1
      %s74 = scalar_select %p71, %s72, %s73
      %p77 = pneg %p71
      %p78 = scmp.eq.s32.totalorder %s15, 1
      %p79 = por %p77, %p78
      %p80 = scmp.ne.s32.totalorder %s72, %s75
      %p81 = scmp.eq.s32.totalorder %s15, 0
      %p82 = por %p80, %p81
      %p83 = scmp.ne.s32.totalorder %s72, %s75
      %p84 = scmp.eq.s32.totalorder %s20, 1
      %p85 = por %p83, %p84
      %p86 = scmp.ne.s32.totalorder %s75, %s76
      %p87 = scmp.eq.s32.totalorder %s20, 0
      %p88 = por %p86, %p87
      %p89 = scmp.ne.s32.totalorder %s75, %s76
      %p90 = scmp.eq.s32.totalorder %s21, 1
      %p91 = por %p89, %p90
      %p93 = scmp.ne.s32.totalorder %s76, %s92
      %p94 = scmp.eq.s32.totalorder %s21, 0
      %p95 = por %p93, %p94
      %p96 = scmp.le.s32.totalorder 1, %s15
      %p97 = scmp.lt.s32.totalorder %s15, 3
      %p98 = pnand %p96, %p97
      %p99 = pneg %p98
      // Predicated region
      $region9: #{tpu_custom_call.1} parent=5 // pred_check
        _
      $region10: #{tpu_custom_call.1} parent=5 // pred_check_branch
        %101 = sbr.rel (%p98) target = $region12
      $region11: #{tpu_custom_call.1} parent=5 // pred_region
        %s102 = ssub.s32 %s15, 1
        // Predicated region
        $region13: #{tpu_custom_call.1} parent=11 // pred_check
          %p103 = pneg %p36
        $region14: #{tpu_custom_call.1} parent=11 // pred_check_branch
          %105 = sbr.rel (%p103) target = $region16
        $region15: #{tpu_custom_call.1} parent=11 // pred_region
          %s107 = ssub.s32 16, 16
          %108 = vsyncadd [#allocation6], %s107
          %111 = dma.hbm_to_smem %s0, 16, [#allocation3], [#allocation6]
        $region16: #{tpu_custom_call.1} parent=11 // pred_fallthru
          _
      $region12: #{tpu_custom_call.1} parent=5 // pred_fallthru
        _
      %p112 = scmp.lt.s32.totalorder %s15, 2
      // Predicated region
      $region17: #{tpu_custom_call.1} parent=5 // pred_check
        %p113 = pneg %p112
      $region18: #{tpu_custom_call.1} parent=5 // pred_check_branch
        %115 = sbr.rel (%p113) target = $region20
      $region19: #{tpu_custom_call.1} parent=5 // pred_region
        // Predicated region
        $region21: #{tpu_custom_call.1} parent=19 // pred_check
          %p116 = pneg %p56
        $region22: #{tpu_custom_call.1} parent=19 // pred_check_branch
          %118 = sbr.rel (%p116) target = $region24
        $region23: #{tpu_custom_call.1} parent=19 // pred_region
          %s119 = sand.u32 %s46, 1
          %s120 = scalar_lea.sflag [#allocation4], %s119
          %s121 = sand.u32 %s46, 1
          %s122 = smul.addr %s121, 64
          %s123 = scalar_lea.vmem [#allocation7], %s122
          %s124 = smul.u32 2, %s15
          %s125 = ssub.s32 3, %s124
          %p126 = scmp.lt.s32.totalorder %s125, 2
          %s127 = scalar_select %p126, %s125, 2
          %s128 = smul.u32 128, %s127
          %s129 = smul.u32 %s128, 2
          %s130 = smul.u32 %s129, 2
          %s132 = ssub.s32 1024, %s130
          %133 = vsyncadd %s120, %s132
          %p134 = scmp.ne.s32.totalorder 0, %s130
          %s135 = smul.addr %s124, 4
          %s136 = smul.addr %s135, 128
          %s137 = scalar_lea.hbm %s1, %s136
          %s138 = smul.u32 %s127, 2
          %s139 = smul.u32 16, %s138
          %s140 = sshll.u32 %s123, 4
          %s141 = int_to_ptr.vmem [resolvable:$true] %s140
          %s142 = sshll.u32 %s139, 4
          %146 = dma.hbm_to_vmem [thread:$0]  (%p134), %s137, %s142, %s141, %s120, 256, 256, 16
        $region24: #{tpu_custom_call.1} parent=19 // pred_fallthru
          _
      $region20: #{tpu_custom_call.1} parent=5 // pred_fallthru
        _
      %p147 = scmp.le.s32.totalorder 1, %s15
      %p148 = scmp.lt.s32.totalorder %s15, 3
      %p149 = pnand %p147, %p148
      %p150 = pneg %p149
      // Predicated region
      $region25: #{tpu_custom_call.1} parent=5 // pred_check
        _
      $region26: #{tpu_custom_call.1} parent=5 // pred_check_branch
        %152 = sbr.rel (%p149) target = $region28
      $region27: #{tpu_custom_call.1} parent=5 // pred_region
        %s153 = ssub.s32 %s15, 1
        // Predicated region
        $region29: #{tpu_custom_call.1} parent=27 // pred_check
          %p154 = pneg %p36
        $region30: #{tpu_custom_call.1} parent=27 // pred_check_branch
          %156 = sbr.rel (%p154) target = $region32
        $region31: #{tpu_custom_call.1} parent=27 // pred_region
          %157 = dma.done [#allocation6], 16
        $region32: #{tpu_custom_call.1} parent=27 // pred_fallthru
          _
        %s158 = sand.u32 %s49, 1
        %s159 = scalar_lea.sflag [#allocation4], %s158
        %s160 = sand.u32 %s49, 1
        %s161 = smul.addr %s160, 64
        %s162 = scalar_lea.vmem [#allocation7], %s161
        // Predicated region
        $region33: #{tpu_custom_call.1} parent=27 // pred_check
          %p163 = pneg %p62
        $region34: #{tpu_custom_call.1} parent=27 // pred_check_branch
          %165 = sbr.rel (%p163) target = $region36
        $region35: #{tpu_custom_call.1} parent=27 // pred_region
          %166 = dma.done %s159, 1024
        $region36: #{tpu_custom_call.1} parent=27 // pred_fallthru
          _
        %167 = sfence
        %p168 = pneg %p36
        %p169 = pneg %p33
        %s170 = sand.u32 %s49, 1
        %s171 = scalar_lea.sflag [#allocation4], %s170
        %s172 = sand.u32 %s49, 1
        %s173 = smul.addr %s172, 64
        %s174 = scalar_lea.vmem [#allocation7], %s173
        %p175 = pneg %p62
        %p176 = pneg %p59
        %p177 = pneg %p88
        %p178 = pneg %p85
        %s179 = sand.u32 %s75, 1
        %s180 = scalar_lea.sflag [#allocation5], %s179
        %s181 = sand.u32 %s75, 1
        %s182 = smul.addr %s181, 64
        %s183 = scalar_lea.vmem [#allocation8], %s182
        %s184 = smul.u32 2, %s20
        %s185 = ssub.s32 3, %s184
        %p186 = scmp.lt.s32.totalorder %s185, 2
        %s187 = scalar_select %p186, %s185, 2
        %s188 = smul.u32 128, %s187
        %s189 = smul.u32 %s188, 2
        %s190 = smul.u32 %s189, 2
        %s191 = smul.u32 2, %s20
        %s192 = ssub.s32 3, %s191
        %p193 = scmp.lt.s32.totalorder %s192, 2
        %s194 = scalar_select %p193, %s192, 2
        %s195 = smul.u32 128, %s194
        %s196 = smul.u32 %s195, 2
        %s197 = smul.u32 %s196, 2
        %v198 = vld [vmem:[%s162] sm:$0xff]
        %v199 = vld [vmem:[%s162 + $0x8] sm:$0xff]
        %v200 = vld [vmem:[%s162 + $0x10] sm:$0xff]
        %v201 = vld [vmem:[%s162 + $0x18] sm:$0xff]
        %v202 = vld [vmem:[%s162 + $0x20] sm:$0xff]
        %v203 = vld [vmem:[%s162 + $0x28] sm:$0xff]
        %v204 = vld [vmem:[%s162 + $0x30] sm:$0xff]
        %v205 = vld [vmem:[%s162 + $0x38] sm:$0xff]
        %v206 = vmax.f32 %v198, %v199
        %207 = vmax.xlane.f32.xlu0 %v206
        %v208 = vpop.xlane.xlu0 %207
        %v209 = vmax.f32 %v200, %v201
        %210 = vmax.xlane.f32.xlu0 %v209
        %v211 = vpop.xlane.xlu0 %210
        %v212 = vmax.f32 %v202, %v203
        %213 = vmax.xlane.f32.xlu0 %v212
        %v214 = vpop.xlane.xlu0 %213
        %v215 = vmax.f32 %v204, %v205
        %216 = vmax.xlane.f32.xlu0 %v215
        %v217 = vpop.xlane.xlu0 %216
        %vm218 = vcmask 7168
        %219 = vst.msk [vmem:[#allocation2] sm:$0xff] %vm218, 0.0
        %220 = vst.msk [vmem:[#allocation2 + $0x20] sm:$0xff] %vm218, 0.0
        %221 = vst.msk [vmem:[#allocation2 + $0x18] sm:$0xff] %vm218, 0.0
        %222 = vst.msk [vmem:[#allocation2 + $0x38] sm:$0xff] %vm218, 0.0
        %223 = vst.msk [vmem:[#allocation2 + $0x8] sm:$0xff] %vm218, %v208
        %224 = vst.msk [vmem:[#allocation2 + $0x10] sm:$0xff] %vm218, %v211
        %225 = vst.msk [vmem:[#allocation2 + $0x28] sm:$0xff] %vm218, %v214
        %226 = vst.msk [vmem:[#allocation2 + $0x30] sm:$0xff] %vm218, %v217
        %s227 = sld [smem:[#allocation3]]
        %v228 = vld [vmem:[#allocation2 + $0x7] sm:$0xff]
        %v229 = vld [vmem:[#allocation2 + $0xf] sm:$0xff]
        %v230 = vld [vmem:[#allocation2 + $0x27] sm:$0xff]
        %v231 = vld [vmem:[#allocation2 + $0x2f] sm:$0xff]
        %v232 = vstv %s227
        %v233 = vmul.f32 %v232, %v228
        %v234 = vmul.f32 %v232, %v229
        %v235 = vmul.f32 %v232, %v230
        %v236 = vmul.f32 %v232, %v231
        %v237 = vadd.f32 %v233, 0.0
        %v238 = vadd.f32 %v234, 0.0
        %v239 = vadd.f32 %v235, 0.0
        %v240 = vadd.f32 %v236, 0.0
        %s241 = sld [smem:[#allocation3 + $0x1]]
        %v242 = vld [vmem:[#allocation2 + $0x8] sm:$0xff]
        %v243 = vld [vmem:[#allocation2 + $0x10] sm:$0xff]
        %v244 = vld [vmem:[#allocation2 + $0x28] sm:$0xff]
        %v245 = vld [vmem:[#allocation2 + $0x30] sm:$0xff]
        %v246 = vstv %s241
        %v247 = vmul.f32 %v246, %v242
        %v248 = vmul.f32 %v246, %v243
        %v249 = vmul.f32 %v246, %v244
        %v250 = vmul.f32 %v246, %v245
        %v251 = vadd.f32 %v237, %v247
        %v252 = vadd.f32 %v238, %v248
        %v253 = vadd.f32 %v239, %v249
        %v254 = vadd.f32 %v240, %v250
        %s255 = sld [smem:[#allocation3 + $0x2]]
        %v256 = vld [vmem:[#allocation2 + $0x9] sm:$0xff]
        %v257 = vld [vmem:[#allocation2 + $0x11] sm:$0xff]
        %v258 = vld [vmem:[#allocation2 + $0x29] sm:$0xff]
        %v259 = vld [vmem:[#allocation2 + $0x31] sm:$0xff]
        %v260 = vstv %s255
        %v261 = vmul.f32 %v260, %v256
        %v262 = vmul.f32 %v260, %v257
        %v263 = vmul.f32 %v260, %v258
        %v264 = vmul.f32 %v260, %v259
        %v265 = vadd.f32 %v251, %v261
        %v266 = vadd.f32 %v252, %v262
        %v267 = vadd.f32 %v253, %v263
        %v268 = vadd.f32 %v254, %v264
        %v269 = vxor.u32 %v265, 2147483648
        %v270 = vxor.u32 %v266, 2147483648
        %v271 = vxor.u32 %v267, 2147483648
        %v272 = vxor.u32 %v268, 2147483648
        %v273 = vmul.f32 %v269, 1.442695
        %v274 = vpow.pop %v273
        %v275 = vmul.f32 %v270, 1.442695
        %v276 = vpow.pop %v275
        %v277 = vmul.f32 %v271, 1.442695
        %v278 = vpow.pop %v277
        %v279 = vmul.f32 %v272, 1.442695
        %v280 = vpow.pop %v279
        %v281 = vadd.f32 %v274, 1.0
        %v282 = vadd.f32 %v276, 1.0
        %v283 = vadd.f32 %v278, 1.0
        %v284 = vadd.f32 %v280, 1.0
        %v285 = vrcp.pop %v281
        %v286 = vmul.f32 1.0, %v285
        %v287 = vrcp.pop %v282
        %v288 = vmul.f32 1.0, %v287
        %v289 = vrcp.pop %v283
        %v290 = vmul.f32 1.0, %v289
        %v291 = vrcp.pop %v284
        %v292 = vmul.f32 1.0, %v291
        %294 = vset.pattern.permute.xlu0 0
        %295 = vperm.xlu0 %294, %v286
        %v296 = vpop.permute.xlu0 %295
        %299 = vset.pattern.permute.xlu0 0
        %300 = vperm.xlu0 %299, %v288
        %v301 = vpop.permute.xlu0 %300
        %304 = vset.pattern.permute.xlu0 0
        %305 = vperm.xlu0 %304, %v290
        %v306 = vpop.permute.xlu0 %305
        %309 = vset.pattern.permute.xlu0 0
        %310 = vperm.xlu0 %309, %v292
        %v311 = vpop.permute.xlu0 %310
        %v313 = vmul.f32 %v198, %v296
        %v314 = vmul.f32 %v199, %v296
        %v315 = vmul.f32 %v200, %v301
        %v316 = vmul.f32 %v201, %v301
        %v317 = vmul.f32 %v202, %v306
        %v318 = vmul.f32 %v203, %v306
        %v319 = vmul.f32 %v204, %v311
        %v320 = vmul.f32 %v205, %v311
        %321 = vst [vmem:[%s183] sm:$0xff] %v313
        %322 = vst [vmem:[%s183 + $0x8] sm:$0xff] %v314
        %323 = vst [vmem:[%s183 + $0x10] sm:$0xff] %v315
        %324 = vst [vmem:[%s183 + $0x18] sm:$0xff] %v316
        %325 = vst [vmem:[%s183 + $0x20] sm:$0xff] %v317
        %326 = vst [vmem:[%s183 + $0x28] sm:$0xff] %v318
        %327 = vst [vmem:[%s183 + $0x30] sm:$0xff] %v319
        %328 = vst [vmem:[%s183 + $0x38] sm:$0xff] %v320
        %s329 = sand.u32 %s75, 1
        %s330 = scalar_lea.sflag [#allocation5], %s329
        %s331 = sand.u32 %s75, 1
        %s332 = smul.addr %s331, 64
        %s333 = scalar_lea.vmem [#allocation8], %s332
        // Predicated region
        $region37: #{tpu_custom_call.1} parent=27 // pred_check
          %p334 = pneg %p85
        $region38: #{tpu_custom_call.1} parent=27 // pred_check_branch
          %336 = sbr.rel (%p334) target = $region40
        $region39: #{tpu_custom_call.1} parent=27 // pred_region
          %s337 = smul.u32 2, %s20
          %s338 = ssub.s32 3, %s337
          %p339 = scmp.lt.s32.totalorder %s338, 2
          %s340 = scalar_select %p339, %s338, 2
          %s341 = smul.u32 128, %s340
          %s342 = smul.u32 %s341, 2
          %s343 = smul.u32 %s342, 2
          %s345 = ssub.s32 1024, %s343
          %346 = vsyncadd %s330, %s345
          %p347 = scmp.ne.s32.totalorder 0, %s343
          %s348 = smul.addr %s337, 4
          %s349 = smul.addr %s348, 128
          %s350 = scalar_lea.hbm %s2, %s349
          %s351 = smul.u32 %s340, 2
          %s352 = smul.u32 16, %s351
          %s353 = sshll.u32 %s333, 4
          %s354 = int_to_ptr.vmem [resolvable:$true] %s353
          %s355 = sshll.u32 %s352, 4
          %359 = dma.vmem_to_hbm [thread:$0]  (%p347), %s354, %s355, %s350, %s330, 256, 256, 16
        $region40: #{tpu_custom_call.1} parent=27 // pred_fallthru
          _
      $region28: #{tpu_custom_call.1} parent=5 // pred_fallthru
        _
      %p360 = scmp.le.s32.totalorder 2, %s15
      // Predicated region
      $region41: #{tpu_custom_call.1} parent=5 // pred_check
        %p361 = pneg %p360
      $region42: #{tpu_custom_call.1} parent=5 // pred_check_branch
        %363 = sbr.rel (%p361) target = $region44
      $region43: #{tpu_custom_call.1} parent=5 // pred_region
        %s364 = ssub.s32 %s15, 2
        // Predicated region
        $region45: #{tpu_custom_call.1} parent=43 // pred_check
          %p365 = pneg %p91
        $region46: #{tpu_custom_call.1} parent=43 // pred_check_branch
          %367 = sbr.rel (%p365) target = $region48
        $region47: #{tpu_custom_call.1} parent=43 // pred_region
          %s368 = sand.u32 %s76, 1
          %s369 = scalar_lea.sflag [#allocation5], %s368
          %s370 = sand.u32 %s76, 1
          %s371 = smul.addr %s370, 64
          %s372 = scalar_lea.vmem [#allocation8], %s371
          %373 = dma.done %s369, 1024
        $region48: #{tpu_custom_call.1} parent=43 // pred_fallthru
          _
      $region44: #{tpu_custom_call.1} parent=5 // pred_fallthru
        _
    $region6: #{tpu_custom_call.1} parent=1 // loop_footer
      %s19 = sadd.s32 1, %s15
    $region7: #{tpu_custom_call.1} parent=1 // loop_footer_branch
      %14 = sbr.rel target = $region3
    $region8: #{tpu_custom_call.1} parent=1 // loop_exit
      _
    %374 = vsyncpa [#allocation4], 1
    %s375 = scalar_lea.sflag [#allocation4], 1
    %376 = vsyncpa %s375, 1
    %377 = vsyncpa [#allocation5], 1
    %s378 = scalar_lea.sflag [#allocation5], 1
    %379 = vsyncpa %s378, 1
    %380 = vsyncpa [#allocation6], 1
    %s381 = scalar_lea.sflag [#allocation6], 1
    %382 = vsyncpa %s381, 1

</llo_original>
